<compile_context>
chip_gen: v6e
topology: v6e:2x2x1
jax: 0.10.0
libtpu: 0.0.40
codegen_flags: <defaults>
</compile_context>

<pallas_src>
import math

import jax
import jax.numpy as jnp
import numpy as np
from jax.experimental import pallas as pl
from jax.experimental.pallas import tpu as pltpu

# Deterministic "parameters" copied straight from the module's __init__.
MC_MAX_CLOSE = [1, 1, 1, 1, 1, 1, 1, 1, 648, 1, 764, 1, 28, 1, 261, 1]
MC_MAX_FAR = [1, 1, 1, 1, 1, 1, 1, 1, 1, 1, 1, 1, 1, 1, 1, 1, 1, 1, 1, 1, 1, 1, 1,
              10, 1, 835, 1, 716, 1, 1095, 1, 1173, 1, 426, 1, 56, 1, 545, 1, 1, 1,
              1714, 1, 62, 1]

_LANES = 128
_TARGET_BLOCK_BYTES = 4 << 20  # ~4 MiB x/out blocks (f32)


def _normalizer_kernel(x_ref, inv_ref, o_ref):
    # x_ref / o_ref: (g_block, rm, 128) lane-dense tiles in VMEM.
    # inv_ref: (1, rm, 128) — one period of the flattened 1/max pattern,
    # broadcast across the leading block dim (pure VPU replay, free here).
    # out = clip(x, 0, max) / max  ==  clip(x * (1/max), 0, 1)   (max > 0, min == 0)
    o_ref[...] = jnp.clip(x_ref[...] * inv_ref[...], 0.0, 1.0)


def data_normalizer(item: jax.Array, is_close: bool = True) -> jax.Array:
    """Pallas implementation of DataNormalizer.forward.

    item: array whose last dim is F == 16 (is_close) or 45. Any leading dims.
    """
    mc_max = MC_MAX_CLOSE if is_close else MC_MAX_FAR
    f = len(mc_max)

    x = jnp.asarray(item, dtype=jnp.float32)
    assert x.shape[-1] == f, (x.shape, f)
    orig_shape = x.shape
    n = x.size

    # One "pattern group" = rm rows of 128 lanes; rm is a multiple of 8 (sublane
    # tile) and rm*128 is a multiple of F, so the flattened per-feature scale
    # pattern restarts at every group (and hence every block) boundary.
    p_rows = math.lcm(f, _LANES) // _LANES
    rm = math.lcm(p_rows, 8)
    group_elems = rm * _LANES

    n_groups = max(1, pl.cdiv(n, group_elems))
    padded_n = n_groups * group_elems

    # Block sizing: ~4 MiB, capped so grid >= 2 when there is enough data
    # (v7x dual-TensorCore sharding via the "parallel" grid axis).
    target_groups = max(1, _TARGET_BLOCK_BYTES // (group_elems * 4))
    half_groups = pl.cdiv(n_groups, 2)
    g_block = max(1, min(target_groups, half_groups))
    grid = pl.cdiv(n_groups, g_block)

    # Flatten row-major; pad only up to one group (skipped entirely when the
    # size is already aligned — the contiguous reshape is free).
    x_flat = x.reshape(-1)
    if padded_n != n:
        x_flat = jnp.pad(x_flat, (0, padded_n - n))
    x3d = x_flat.reshape(n_groups, rm, _LANES)

    # Precomputed reciprocal 1/(max - min) (min == 0), one pattern period only.
    inv = 1.0 / np.asarray(mc_max, dtype=np.float32)
    inv3d = jnp.asarray(np.tile(inv, group_elems // f).reshape(1, rm, _LANES))

    # x/out double-buffers + inv (double-buffered) + headroom.
    block_bytes = g_block * group_elems * 4
    inv_bytes = group_elems * 4
    vmem_limit = int(max(4 * block_bytes + 2 * inv_bytes + (4 << 20), 16 << 20))

    out3d = pl.pallas_call(
        _normalizer_kernel,
        out_shape=jax.ShapeDtypeStruct((n_groups, rm, _LANES), jnp.float32),
        grid=(grid,),
        in_specs=[
            pl.BlockSpec((g_block, rm, _LANES), lambda i: (i, 0, 0)),
            pl.BlockSpec((1, rm, _LANES), lambda i: (0, 0, 0)),  # fetched once
        ],
        out_specs=pl.BlockSpec((g_block, rm, _LANES), lambda i: (i, 0, 0)),
        compiler_params=pltpu.CompilerParams(
            dimension_semantics=("parallel",),
            vmem_limit_bytes=vmem_limit,
        ),
    )(x3d, inv3d)

    out_flat = out3d.reshape(-1)
    if padded_n != n:
        out_flat = out_flat[:n]
    return out_flat.reshape(orig_shape)


if __name__ == "__main__":
    key = jax.random.PRNGKey(0)
    k1, k2, k3 = jax.random.split(key, 3)

    mx_close = jnp.asarray(MC_MAX_CLOSE, jnp.float32)
    mx_far = jnp.asarray(MC_MAX_FAR, jnp.float32)

    # is_close=True -> 16 features. Values span below-min, in-range, above-max.
    item_close = jax.random.uniform(k1, (8, 16), dtype=jnp.float32,
                                    minval=-50.0, maxval=1000.0)
    out_close = jax.block_until_ready(data_normalizer(item_close, is_close=True))
    ref_close = jnp.clip(item_close, 0.0, mx_close) / mx_close
    assert jnp.allclose(out_close, ref_close, atol=1e-6), "mismatch (is_close=True)"

    # is_close=False -> 45 features.
    item_far = jax.random.uniform(k2, (8, 45), dtype=jnp.float32,
                                  minval=-50.0, maxval=2000.0)
    out_far = jax.block_until_ready(data_normalizer(item_far, is_close=False))
    ref_far = jnp.clip(item_far, 0.0, mx_far) / mx_far
    assert jnp.allclose(out_far, ref_far, atol=1e-6), "mismatch (is_close=False)"

    # Non-aligned size: exercises the pad path, grid of 2, and a partial
    # trailing block (write-back clamped by Pallas).
    item_big = jax.random.uniform(k3, (257, 16), dtype=jnp.float32,
                                  minval=-50.0, maxval=1000.0)
    out_big = jax.block_until_ready(data_normalizer(item_big, is_close=True))
    ref_big = jnp.clip(item_big, 0.0, mx_close) / mx_close
    assert jnp.allclose(out_big, ref_big, atol=1e-6), "mismatch (padded/partial case)"

    print("KERNEL_OK")
</pallas_src>

<mosaic_0001>
module attributes {stable_mosaic.version = 11 : i64} {
  func.func @_normalizer_kernel(%arg0: i32, %arg1: memref<1x8x128xf32, #tpu.memory_space<vmem>>, %arg2: memref<1x8x128xf32, #tpu.memory_space<vmem>>, %arg3: memref<1x8x128xf32, #tpu.memory_space<vmem>>) attributes {dimension_semantics = [#tpu.dimension_semantics<parallel>], iteration_bounds = array<i64: 1>, scalar_prefetch = 0 : i64, scratch_operands = 0 : i64, tpu.core_type = #tpu.core_type<tc>, window_params = [{transform_indices = @transform_0, window_bounds = array<i64: 1, 8, 128>}, {pipeline_mode = #tpu.pipeline_mode<synchronous>, transform_indices = @transform_1, window_bounds = array<i64: 1, 8, 128>}, {transform_indices = @transform_2, window_bounds = array<i64: 1, 8, 128>}]} {
    %c0 = arith.constant 0 : index
    %c0_0 = arith.constant 0 : index
    %c0_1 = arith.constant 0 : index
    %0 = vector.load %arg1[%c0, %c0_0, %c0_1] : memref<1x8x128xf32, #tpu.memory_space<vmem>>, vector<1x8x128xf32>
    %c0_2 = arith.constant 0 : index
    %c0_3 = arith.constant 0 : index
    %c0_4 = arith.constant 0 : index
    %1 = vector.load %arg2[%c0_2, %c0_3, %c0_4] : memref<1x8x128xf32, #tpu.memory_space<vmem>>, vector<1x8x128xf32>
    %2 = arith.mulf %0, %1 : vector<1x8x128xf32>
    %cst = arith.constant 0.000000e+00 : f32
    %cst_5 = arith.constant 1.000000e+00 : f32
    %3 = vector.broadcast %cst : f32 to vector<1x8x128xf32>
    %4 = arith.maximumf %3, %2 : vector<1x8x128xf32>
    %5 = vector.broadcast %cst_5 : f32 to vector<1x8x128xf32>
    %6 = arith.minimumf %5, %4 : vector<1x8x128xf32>
    %c0_6 = arith.constant 0 : index
    %c0_7 = arith.constant 0 : index
    %c0_8 = arith.constant 0 : index
    %7 = vector.load %arg3[%c0_6, %c0_7, %c0_8] : memref<1x8x128xf32, #tpu.memory_space<vmem>>, vector<1x8x128xf32>
    tpu.vector_store %arg3[%c0_6, %c0_7, %c0_8], %6 {strides = array<i32>} : memref<1x8x128xf32, #tpu.memory_space<vmem>>, vector<1x8x128xf32>,
    return
  }
  func.func @transform_0(%arg0: i32) -> (i32, i32, i32) {
    %c0_i32 = arith.constant 0 : i32
    %c0_i32_0 = arith.constant 0 : i32
    %c0_i32_1 = arith.constant 0 : i32
    return %arg0, %c0_i32, %c0_i32_0 : i32, i32, i32
  }
  func.func @transform_1(%arg0: i32) -> (i32, i32, i32) {
    %c0_i32 = arith.constant 0 : i32
    %c0_i32_0 = arith.constant 0 : i32
    %c0_i32_1 = arith.constant 0 : i32
    %c0_i32_2 = arith.constant 0 : i32
    return %c0_i32, %c0_i32_0, %c0_i32_1 : i32, i32, i32
  }
  func.func @transform_2(%arg0: i32) -> (i32, i32, i32) {
    %c0_i32 = arith.constant 0 : i32
    %c0_i32_0 = arith.constant 0 : i32
    %c0_i32_1 = arith.constant 0 : i32
    return %arg0, %c0_i32, %c0_i32_0 : i32, i32, i32
  }
}

</mosaic_0001>

<llo_original>
// kernel: tpu_custom_call.1
$region0: #{tpu_custom_call.1}
  #allocation0 [shape = 'u32[]', space=smem, size = 0x4, offset = 0x4, fixed_abs, tag = 'smem constant byte address 0x4 - core index']
  #allocation1 [shape = 'u32[144,128]{1,0:T(1,128)}', space=vmem, size = 0x12000, scoped, tag = 'internal scratch']
  %s0 = inlined_call_operand.hbm [shape: f32[1,8,128], index: 0, kind: input, shape index: {}]
  %s1 = inlined_call_operand.hbm [shape: f32[1,8,128], index: 1, kind: input, shape index: {}]
  %s2 = inlined_call_operand.hbm [shape: f32[1,8,128], index: 2, kind: output, shape index: {}]
  %s3 = sld [smem:[#allocation0]]
  $region26: #{tpu_custom_call.1} parent=0
    _
  %s5 = ssub.s32 1, %s3
  %s6 = scalar_select 0, %s5, %s3
  $region1: #{tpu_custom_call.1} parent=0
    #allocation2 [shape = 'u8[4096]{0}', space=vmem, size = 0x1000, scoped, tag = 'input window, operand 0, single buffered']
    #allocation3 [shape = 's32[1]{0}', space=sflag, size = 0x4, scoped, tag = 'scoped memory for tpu_custom_call.1']
    #allocation4 [shape = 's32[1]{0}', space=sflag, size = 0x4, scoped, tag = 'scoped memory for tpu_custom_call.1']
    #allocation5 [shape = 'u8[4096]{0}', space=vmem, size = 0x1000, scoped, tag = 'input window, operand 1, single buffered']
    #allocation6 [shape = 's32[1]{0}', space=sflag, size = 0x4, scoped, tag = 'scoped memory for tpu_custom_call.1']
    #allocation7 [shape = 'u8[4096]{0}', space=vmem, size = 0x1000, scoped, tag = 'output window, operand 0, single buffered']
    %7 = vsyncpa [#allocation3], 0
    %8 = vsyncpa [#allocation6], 0
    %9 = vsyncpa [#allocation4], 0
    // Predicated region
    $region2: #{tpu_custom_call.1} parent=1 // pred_check
      _
    $region3: #{tpu_custom_call.1} parent=1 // pred_check_branch
      %11 = sbr.rel (0) target = $region5
    $region4: #{tpu_custom_call.1} parent=1 // pred_region
      %s13 = ssub.s32 128, 128
      %14 = vsyncadd [#allocation3], %s13
      %s16 = sshll.u32 [#allocation2], 4
      %s17 = int_to_ptr.vmem [resolvable:$true] %s16
      %19 = dma.hbm_to_vmem [thread:$0]  %s0, 128, %s17, [#allocation3]
    $region5: #{tpu_custom_call.1} parent=1 // pred_fallthru
      _
    // Predicated region
    $region6: #{tpu_custom_call.1} parent=1 // pred_check
      _
    $region7: #{tpu_custom_call.1} parent=1 // pred_check_branch
      %21 = sbr.rel (0) target = $region9
    $region8: #{tpu_custom_call.1} parent=1 // pred_region
      %s23 = ssub.s32 128, 128
      %24 = vsyncadd [#allocation6], %s23
      %s26 = sshll.u32 [#allocation5], 4
      %s27 = int_to_ptr.vmem [resolvable:$true] %s26
      %29 = dma.hbm_to_vmem [thread:$0]  %s1, 128, %s27, [#allocation6]
    $region9: #{tpu_custom_call.1} parent=1 // pred_fallthru
      _
    // Predicated region
    $region10: #{tpu_custom_call.1} parent=1 // pred_check
      _
    $region11: #{tpu_custom_call.1} parent=1 // pred_check_branch
      %31 = sbr.rel (0) target = $region13
    $region12: #{tpu_custom_call.1} parent=1 // pred_region
      %32 = dma.done [#allocation3], 128
    $region13: #{tpu_custom_call.1} parent=1 // pred_fallthru
      _
    // Predicated region
    $region14: #{tpu_custom_call.1} parent=1 // pred_check
      _
    $region15: #{tpu_custom_call.1} parent=1 // pred_check_branch
      %34 = sbr.rel (0) target = $region17
    $region16: #{tpu_custom_call.1} parent=1 // pred_region
      %35 = dma.done [#allocation6], 128
    $region17: #{tpu_custom_call.1} parent=1 // pred_fallthru
      _
    %v36 = vld [vmem:[#allocation2] sm:$0xff]
    %v37 = vld [vmem:[#allocation5] sm:$0xff]
    %v38 = vmul.f32 %v36, %v37
    %v39 = vmax.f32 %v38, 0.0
    %v40 = vmin.f32 %v39, 1.0
    %41 = vst [vmem:[#allocation7] sm:$0xff] %v40
    // Predicated region
    $region18: #{tpu_custom_call.1} parent=1 // pred_check
      _
    $region19: #{tpu_custom_call.1} parent=1 // pred_check_branch
      %43 = sbr.rel (0) target = $region21
    $region20: #{tpu_custom_call.1} parent=1 // pred_region
      %s45 = ssub.s32 128, 128
      %46 = vsyncadd [#allocation4], %s45
      %s48 = sshll.u32 [#allocation7], 4
      %s49 = int_to_ptr.vmem [resolvable:$true] %s48
      %51 = dma.vmem_to_hbm [thread:$0]  %s49, 128, %s2, [#allocation4]
    $region21: #{tpu_custom_call.1} parent=1 // pred_fallthru
      _
    // Predicated region
    $region22: #{tpu_custom_call.1} parent=1 // pred_check
      _
    $region23: #{tpu_custom_call.1} parent=1 // pred_check_branch
      %53 = sbr.rel (0) target = $region25
    $region24: #{tpu_custom_call.1} parent=1 // pred_region
      %54 = dma.done [#allocation4], 128
    $region25: #{tpu_custom_call.1} parent=1 // pred_fallthru
      _
    %55 = vsyncpa [#allocation3], 1
    %56 = vsyncpa [#allocation6], 1
    %57 = vsyncpa [#allocation4], 1

</llo_original>
